<compile_context>
chip_gen: v7x
topology: tpu7x:2x2x1
jax: 0.10.0
libtpu: 0.0.40
codegen_flags: <defaults>
</compile_context>

<pallas_src>
import functools

import jax
import jax.numpy as jnp
from jax.experimental import pallas as pl
from jax.experimental.pallas import tpu as pltpu


def feature_interp_kernel(x_ref, img_ref, edge_ref, o_ref, *, W):
    """One (image, channel-tile) grid step.

    x_ref:    (CT, H*W)  feature channels, spatial dims flattened onto lanes
    img_ref:  (2,  H*W)  per-image rows: [valid (=1-mask), scale (=mask/count)]
    edge_ref: (4,  H*W)  image-invariant rows: [has_left, has_right, has_up, has_down]
    o_ref:    (CT, H*W)
    """
    HW = x_ref.shape[-1]
    valid = img_ref[0:1, :]
    scale = img_ref[1:2, :]
    has_l = edge_ref[0:1, :]
    has_r = edge_ref[1:2, :]
    has_u = edge_ref[2:3, :]
    has_d = edge_ref[3:4, :]

    xm = x_ref[...] * valid                       # x * (1 - mask): holes zeroed

    # Separable 3x3 box-sum on the flattened (H*W) lane axis.
    # roll(a, s)[j] == a[j - s]; every lane where a shift wraps across a row
    # (or around the image) is exactly a lane the edge mask zeroes.
    xw = (xm
          + pltpu.roll(xm, 1, 1) * has_l          # left  neighbour (j-1)
          + pltpu.roll(xm, HW - 1, 1) * has_r)    # right neighbour (j+1)
    box = (xw
           + pltpu.roll(xw, W, 1) * has_u         # upper neighbour (j-W)
           + pltpu.roll(xw, HW - W, 1) * has_d)   # lower neighbour (j+W)

    # out = x*(1-mask) + (box / valid_count) * mask ; mask/valid_count was
    # pre-folded into `scale` on the host side.
    o_ref[...] = xm + box * scale


def _round_up(v, m):
    return (v + m - 1) // m * m


def _vmem_limit_bytes():
    """Scoped-VMEM limit with headroom: ~48 MiB on v7x, 96 MiB on v5e/v6e."""
    phys = 64 * 1024 * 1024                       # conservative fallback (v7x)
    try:
        info = pltpu.get_tpu_info()
        phys = int(getattr(info, "vmem_capacity_bytes", phys))
    except Exception:
        pass
    return min(96 * 1024 * 1024, (phys * 3) // 4)


def _pick_channel_tile(N, C, HW, itemsize, vmem_limit):
    """Largest channel tile whose real VMEM working set fits comfortably."""
    # Real bytes of one (ct, HW) tile row, including (8, 128) layout padding.
    lane_bytes = _round_up(HW, 128) * itemsize
    # Per grid step: double-buffered in + out blocks (4 tiles) plus ~5 live
    # full-tile temporaries in the body (xm, rolled copies, xw, box, masked
    # products), plus slack for the aux rows and compiler scratch.
    tiles_resident = 10
    budget = int(vmem_limit * 0.75)
    max_rows = (budget // (tiles_resident * lane_bytes)) // 8 * 8
    max_rows = max(8, max_rows)

    cap = C
    if N == 1 and C > 8:
        # Keep >= 2 channel tiles so both v7x TensorCores get grid work.
        cap = _round_up(pl.cdiv(C, 2), 8)

    ct = min(cap, max_rows)
    if ct >= C or C <= 8:
        return C                                  # one full-channel tile
    # Partial tiles must keep the sublane dim a multiple of 8 ((8,128) rule).
    return max(8, (ct // 8) * 8)


def feature_interpolator(x, mask):
    """x: (N, C, H, W) float32; mask: (N, 1, H, W) float32, 1 = hole to fill."""
    N, C, H, W = x.shape
    HW = H * W
    dt = x.dtype

    # ---- host-side (plain JAX) precompute of all mask-only quantities -----
    hole = mask.reshape(N, H, W).astype(dt)       # 1 where feature is re-interpolated
    valid = 1.0 - hole                            # 1 where original feature is kept
    vp = jnp.pad(valid, ((0, 0), (1, 1), (1, 1)))
    cnt = sum(vp[:, di:di + H, dj:dj + W]         # 3x3 box-sum of valid = valid_count
              for di in range(3) for dj in range(3))
    # Fold mask and 1/valid_count into one per-pixel factor.  Where a hole has
    # no valid pixel in its 3x3 window, cnt == 0 and the output is NaN, which
    # matches PyTorch's 0/0 behaviour for such non-"edge" masks.
    scale = hole / cnt
    img_aux = jnp.stack([valid.reshape(N, HW), scale.reshape(N, HW)], axis=1)  # (N,2,HW)

    # Image-invariant edge masks implementing the conv's zero padding: which
    # lanes of the flattened (H*W) axis have a left/right/up/down neighbour.
    col = jnp.arange(HW, dtype=jnp.int32) % W
    row = jnp.arange(HW, dtype=jnp.int32) // W
    edge_aux = jnp.stack([
        (col >= 1).astype(dt), (col <= W - 2).astype(dt),
        (row >= 1).astype(dt), (row <= H - 2).astype(dt)], axis=0)             # (4, HW)

    x2 = x.reshape(N, C, HW)

    vmem_limit = _vmem_limit_bytes()
    ct = _pick_channel_tile(N, C, HW, x2.dtype.itemsize, vmem_limit)
    grid = (N, pl.cdiv(C, ct))

    out2 = pl.pallas_call(
        functools.partial(feature_interp_kernel, W=W),
        out_shape=jax.ShapeDtypeStruct((N, C, HW), dt),
        grid_spec=pltpu.PrefetchScalarGridSpec(
            num_scalar_prefetch=0,
            grid=grid,
            in_specs=[
                pl.BlockSpec((pl.Squeezed(), ct, HW), lambda n, c: (n, c, 0)),
                pl.BlockSpec((pl.Squeezed(), 2, HW), lambda n, c: (n, 0, 0)),
                pl.BlockSpec((4, HW), lambda n, c: (0, 0)),
            ],
            out_specs=pl.BlockSpec((pl.Squeezed(), ct, HW), lambda n, c: (n, c, 0)),
        ),
        compiler_params=pltpu.CompilerParams(
            dimension_semantics=("parallel", "parallel"),
            vmem_limit_bytes=vmem_limit,
        ),
    )(x2, img_aux, edge_aux)
    return out2.reshape(N, C, H, W)


def reference(x, mask):
    """Pure-JAX reference with the exact PyTorch math (for correctness check)."""
    m = 1.0 - mask                                # (N,1,H,W)
    xm = x * m
    H, W = x.shape[2], x.shape[3]
    xm_p = jnp.pad(xm, ((0, 0), (0, 0), (1, 1), (1, 1)))
    m_p = jnp.pad(m, ((0, 0), (0, 0), (1, 1), (1, 1)))
    box = sum(xm_p[:, :, di:di + H, dj:dj + W]
              for di in range(3) for dj in range(3))
    cnt = sum(m_p[:, :, di:di + H, dj:dj + W]
              for di in range(3) for dj in range(3))
    new_x = box / cnt
    return xm + new_x * (1.0 - m)


if __name__ == "__main__":
    N, C, H, W = 2, 4, 16, 16
    key = jax.random.PRNGKey(0)
    x = jax.random.normal(key, (N, C, H, W), dtype=jnp.float32)

    # Edge-like binary mask (thin lines of holes) so every hole pixel has at
    # least one valid neighbour and valid_count stays nonzero (the intended
    # "edge" usage; 0/0 would be NaN in both PyTorch and here).
    mask = jnp.zeros((N, 1, H, W), dtype=jnp.float32)
    mask = mask.at[:, :, H // 2, :].set(1.0)
    mask = mask.at[:, :, :, W // 3].set(1.0)

    out = jax.block_until_ready(feature_interpolator(x, mask))

    ref = reference(x, mask)
    assert out.shape == (N, C, H, W)
    assert jnp.allclose(out, ref, atol=1e-5, rtol=1e-5)
    print("KERNEL_OK")
</pallas_src>

<mosaic_0001>
module attributes {stable_mosaic.version = 11 : i64} {
  func.func @feature_interp_kernel(%arg0: i32, %arg1: i32, %arg2: memref<1x4x256xf32, #tpu.memory_space<vmem>>, %arg3: memref<1x2x256xf32, #tpu.memory_space<vmem>>, %arg4: memref<4x256xf32, #tpu.memory_space<vmem>>, %arg5: memref<1x4x256xf32, #tpu.memory_space<vmem>>) attributes {dimension_semantics = [#tpu.dimension_semantics<parallel>, #tpu.dimension_semantics<parallel>], iteration_bounds = array<i64: 2, 1>, scalar_prefetch = 0 : i64, scratch_operands = 0 : i64, tpu.core_type = #tpu.core_type<tc>, window_params = [{transform_indices = @transform_0, window_bounds = array<i64: 1, 4, 256>}, {transform_indices = @transform_1, window_bounds = array<i64: 1, 2, 256>}, {pipeline_mode = #tpu.pipeline_mode<synchronous>, transform_indices = @transform_2, window_bounds = array<i64: 4, 256>}, {transform_indices = @transform_3, window_bounds = array<i64: 1, 4, 256>}]} {
    %c0 = arith.constant 0 : index
    %c0_0 = arith.constant 0 : index
    %c0_1 = arith.constant 0 : index
    %0 = vector.load %arg3[%c0, %c0_0, %c0_1] : memref<1x2x256xf32, #tpu.memory_space<vmem>>, vector<1x1x256xf32>
    %1 = vector.shape_cast %0 : vector<1x1x256xf32> to vector<1x256xf32>
    %c0_2 = arith.constant 0 : index
    %c1 = arith.constant 1 : index
    %c0_3 = arith.constant 0 : index
    %2 = vector.load %arg3[%c0_2, %c1, %c0_3] : memref<1x2x256xf32, #tpu.memory_space<vmem>>, vector<1x1x256xf32>
    %3 = vector.shape_cast %2 : vector<1x1x256xf32> to vector<1x256xf32>
    %c0_4 = arith.constant 0 : index
    %c0_5 = arith.constant 0 : index
    %4 = vector.load %arg4[%c0_4, %c0_5] : memref<4x256xf32, #tpu.memory_space<vmem>>, vector<1x256xf32>
    %c1_6 = arith.constant 1 : index
    %c0_7 = arith.constant 0 : index
    %5 = vector.load %arg4[%c1_6, %c0_7] : memref<4x256xf32, #tpu.memory_space<vmem>>, vector<1x256xf32>
    %c2 = arith.constant 2 : index
    %c0_8 = arith.constant 0 : index
    %6 = vector.load %arg4[%c2, %c0_8] : memref<4x256xf32, #tpu.memory_space<vmem>>, vector<1x256xf32>
    %c3 = arith.constant 3 : index
    %c0_9 = arith.constant 0 : index
    %7 = vector.load %arg4[%c3, %c0_9] : memref<4x256xf32, #tpu.memory_space<vmem>>, vector<1x256xf32>
    %c0_10 = arith.constant 0 : index
    %c0_11 = arith.constant 0 : index
    %c0_12 = arith.constant 0 : index
    %8 = vector.load %arg2[%c0_10, %c0_11, %c0_12] : memref<1x4x256xf32, #tpu.memory_space<vmem>>, vector<1x4x256xf32>
    %9 = vector.shape_cast %8 : vector<1x4x256xf32> to vector<4x256xf32>
    %10 = vector.broadcast %1 : vector<1x256xf32> to vector<4x256xf32>
    %11 = arith.mulf %9, %10 : vector<4x256xf32>
    %c1_i32 = arith.constant 1 : i32
    %12 = tpu.dynamic_rotate %11 by %c1_i32 dim 1 : vector<4x256xf32>, i32 -> vector<4x256xf32>
    %13 = vector.broadcast %4 : vector<1x256xf32> to vector<4x256xf32>
    %14 = arith.mulf %12, %13 : vector<4x256xf32>
    %15 = arith.addf %11, %14 : vector<4x256xf32>
    %c255_i32 = arith.constant 255 : i32
    %16 = tpu.dynamic_rotate %11 by %c255_i32 dim 1 : vector<4x256xf32>, i32 -> vector<4x256xf32>
    %17 = vector.broadcast %5 : vector<1x256xf32> to vector<4x256xf32>
    %18 = arith.mulf %16, %17 : vector<4x256xf32>
    %19 = arith.addf %15, %18 : vector<4x256xf32>
    %c16_i32 = arith.constant 16 : i32
    %20 = tpu.dynamic_rotate %19 by %c16_i32 dim 1 : vector<4x256xf32>, i32 -> vector<4x256xf32>
    %21 = vector.broadcast %6 : vector<1x256xf32> to vector<4x256xf32>
    %22 = arith.mulf %20, %21 : vector<4x256xf32>
    %23 = arith.addf %19, %22 : vector<4x256xf32>
    %c240_i32 = arith.constant 240 : i32
    %24 = tpu.dynamic_rotate %19 by %c240_i32 dim 1 : vector<4x256xf32>, i32 -> vector<4x256xf32>
    %25 = vector.broadcast %7 : vector<1x256xf32> to vector<4x256xf32>
    %26 = arith.mulf %24, %25 : vector<4x256xf32>
    %27 = arith.addf %23, %26 : vector<4x256xf32>
    %28 = vector.broadcast %3 : vector<1x256xf32> to vector<4x256xf32>
    %29 = arith.mulf %27, %28 : vector<4x256xf32>
    %30 = arith.addf %11, %29 : vector<4x256xf32>
    %c0_13 = arith.constant 0 : index
    %c0_14 = arith.constant 0 : index
    %c0_15 = arith.constant 0 : index
    %31 = vector.load %arg5[%c0_13, %c0_14, %c0_15] : memref<1x4x256xf32, #tpu.memory_space<vmem>>, vector<1x4x256xf32>
    %32 = vector.shape_cast %31 : vector<1x4x256xf32> to vector<4x256xf32>
    %33 = vector.shape_cast %30 : vector<4x256xf32> to vector<1x4x256xf32>
    tpu.vector_store %arg5[%c0_13, %c0_14, %c0_15], %33 {strides = array<i32>} : memref<1x4x256xf32, #tpu.memory_space<vmem>>, vector<1x4x256xf32>,
    return
  }
  func.func @transform_0(%arg0: i32, %arg1: i32) -> (i32, i32, i32) {
    %c0_i32 = arith.constant 0 : i32
    %c0_i32_0 = arith.constant 0 : i32
    return %arg0, %arg1, %c0_i32 : i32, i32, i32
  }
  func.func @transform_1(%arg0: i32, %arg1: i32) -> (i32, i32, i32) {
    %c0_i32 = arith.constant 0 : i32
    %c0_i32_0 = arith.constant 0 : i32
    %c0_i32_1 = arith.constant 0 : i32
    return %arg0, %c0_i32, %c0_i32_0 : i32, i32, i32
  }
  func.func @transform_2(%arg0: i32, %arg1: i32) -> (i32, i32) {
    %c0_i32 = arith.constant 0 : i32
    %c0_i32_0 = arith.constant 0 : i32
    %c0_i32_1 = arith.constant 0 : i32
    return %c0_i32, %c0_i32_0 : i32, i32
  }
  func.func @transform_3(%arg0: i32, %arg1: i32) -> (i32, i32, i32) {
    %c0_i32 = arith.constant 0 : i32
    %c0_i32_0 = arith.constant 0 : i32
    return %arg0, %arg1, %c0_i32 : i32, i32, i32
  }
}

</mosaic_0001>

<llo_original>
// kernel: tpu_custom_call.1
$region0: #{tpu_custom_call.1}
  #allocation0 [shape = 'u32[]', space=smem, size = 0x4, offset = 0x4, fixed_abs, tag = 'smem constant byte address 0x4 - core index']
  #allocation1 [shape = 'u32[144,128]{1,0:T(1,128)}', space=vmem, size = 0x12000, scoped, tag = 'internal scratch']
  %s0 = inlined_call_operand.hbm [shape: f32[2,4,256], index: 0, kind: input, shape index: {}]
  %s1 = inlined_call_operand.hbm [shape: f32[2,2,256], index: 1, kind: input, shape index: {}]
  %s2 = inlined_call_operand.hbm [shape: f32[4,256], index: 2, kind: input, shape index: {}]
  %s3 = inlined_call_operand.hbm [shape: f32[2,4,256], index: 3, kind: output, shape index: {}]
  %s4 = sld [smem:[#allocation0]]
  $region57: #{tpu_custom_call.1} parent=0
    _
  %s6 = ssub.s32 1, %s4
  %s7 = scalar_select 0, %s6, %s4
  $region1: #{tpu_custom_call.1} parent=0
    #allocation2 [shape = 'u8[8192]{0}', space=vmem, size = 0x2000, scoped, tag = 'input window, operand 0']
    #allocation3 [shape = 's32[2]{0}', space=sflag, size = 0x8, scoped, tag = 'scoped memory for tpu_custom_call.1']
    #allocation4 [shape = 's32[2]{0}', space=sflag, size = 0x8, scoped, tag = 'scoped memory for tpu_custom_call.1']
    #allocation5 [shape = 'u8[4096]{0}', space=vmem, size = 0x1000, scoped, tag = 'input window, operand 1']
    #allocation6 [shape = 's32[2]{0}', space=sflag, size = 0x8, scoped, tag = 'scoped memory for tpu_custom_call.1']
    #allocation7 [shape = 'u8[4096]{0}', space=vmem, size = 0x1000, scoped, tag = 'input window, operand 2, single buffered']
    #allocation8 [shape = 'u8[8192]{0}', space=vmem, size = 0x2000, scoped, tag = 'output window, operand 0']
    %8 = vsyncpa [#allocation3], 0
    %s9 = scalar_lea.sflag [#allocation3], 1
    %10 = vsyncpa %s9, 0
    %11 = vsyncpa [#allocation6], 0
    %s12 = scalar_lea.sflag [#allocation6], 1
    %13 = vsyncpa %s12, 0
    %14 = vsyncpa [#allocation4], 0
    %s15 = scalar_lea.sflag [#allocation4], 1
    %16 = vsyncpa %s15, 0
    loop: start=0, step=1, limit=4
    $region2: #{tpu_custom_call.1} parent=1 // loop_pre_header
      _
    $region3: #{tpu_custom_call.1} parent=1 // loop_header
      %s18 = sphi 0, %s22
      %p19 = scmp.ge.s32.totalorder %s18, 4
      %s25 = sphi 0, %s37
      %s26 = sphi 0, %s33
      %s27 = sphi 0, %s25
      %s28 = sphi 0, %s26
      %s29 = sphi 0, %s27
      %s30 = sphi 0, %s28
      %s42 = sphi 0, %s44
      %s45 = sphi 0, %s42
      %s46 = sphi 0, %s45
      %s62 = sphi 0, %s46
      %s68 = sphi 0, %s70
      %s71 = sphi 0, %s68
      %s72 = sphi 0, %s71
      %s88 = sphi 0, %s72
      %s92 = sphi 0, %s92
      %s94 = sphi 0, %s92
      %s95 = sphi 0, %s94
      %s109 = sphi 0, %s95
      %s117 = sphi 0, %s119
      %s120 = sphi 0, %s117
      %s121 = sphi 0, %s120
      %s137 = sphi 0, %s121
    $region4: #{tpu_custom_call.1} parent=1 // loop_header_branch
      %21 = sbr.rel (%p19) target = $region8
    $region5: #{tpu_custom_call.1} parent=1 // loop_body
      %s23 = ssub.s32 %s18, 1
      %s24 = ssub.s32 %s18, 2
      %s31 = sadd.s32 1, %s26
      %p32 = scmp.ge.s32.totalorder %s31, 1
      %s33 = scalar_select %p32, 0, %s31
      %s34 = sadd.s32 1, %s25
      %s35 = scalar_select %p32, %s34, %s25
      %p36 = scmp.ge.s32.totalorder %s35, 2
      %s37 = scalar_select %p36, 0, %s35
      %s38 = ssub.s32 %s25, %s37
      %s39 = ssub.s32 %s26, %s33
      %s40 = sor.u32 %s38, %s39
      %p41 = scmp.eq.s32.totalorder %s40, 0
      %s43 = sadd.s32 %s42, 1
      %s44 = scalar_select %p41, %s42, %s43
      %p47 = pneg %p41
      %p48 = scmp.eq.s32.totalorder %s18, 1
      %p49 = por %p47, %p48
      %p50 = scmp.ne.s32.totalorder %s42, %s45
      %p51 = scmp.eq.s32.totalorder %s18, 0
      %p52 = por %p50, %p51
      %p53 = scmp.ne.s32.totalorder %s42, %s45
      %p54 = scmp.eq.s32.totalorder %s23, 1
      %p55 = por %p53, %p54
      %p56 = scmp.ne.s32.totalorder %s45, %s46
      %p57 = scmp.eq.s32.totalorder %s23, 0
      %p58 = por %p56, %p57
      %p59 = scmp.ne.s32.totalorder %s45, %s46
      %p60 = scmp.eq.s32.totalorder %s24, 1
      %p61 = por %p59, %p60
      %p63 = scmp.ne.s32.totalorder %s46, %s62
      %p64 = scmp.eq.s32.totalorder %s24, 0
      %p65 = por %p63, %p64
      %s66 = ssub.s32 %s25, %s37
      %p67 = scmp.eq.s32.totalorder %s66, 0
      %s69 = sadd.s32 %s68, 1
      %s70 = scalar_select %p67, %s68, %s69
      %p73 = pneg %p67
      %p74 = scmp.eq.s32.totalorder %s18, 1
      %p75 = por %p73, %p74
      %p76 = scmp.ne.s32.totalorder %s68, %s71
      %p77 = scmp.eq.s32.totalorder %s18, 0
      %p78 = por %p76, %p77
      %p79 = scmp.ne.s32.totalorder %s68, %s71
      %p80 = scmp.eq.s32.totalorder %s23, 1
      %p81 = por %p79, %p80
      %p82 = scmp.ne.s32.totalorder %s71, %s72
      %p83 = scmp.eq.s32.totalorder %s23, 0
      %p84 = por %p82, %p83
      %p85 = scmp.ne.s32.totalorder %s71, %s72
      %p86 = scmp.eq.s32.totalorder %s24, 1
      %p87 = por %p85, %p86
      %p89 = scmp.ne.s32.totalorder %s72, %s88
      %p90 = scmp.eq.s32.totalorder %s24, 0
      %p91 = por %p89, %p90
      %s93 = sadd.s32 %s92, 1
      %p96 = scmp.eq.s32.totalorder %s18, 1
      %p97 = scmp.ne.s32.totalorder %s92, %s94
      %p98 = scmp.eq.s32.totalorder %s18, 0
      %p99 = por %p97, %p98
      %p100 = scmp.ne.s32.totalorder %s92, %s94
      %p101 = scmp.eq.s32.totalorder %s23, 1
      %p102 = por %p100, %p101
      %p103 = scmp.ne.s32.totalorder %s94, %s95
      %p104 = scmp.eq.s32.totalorder %s23, 0
      %p105 = por %p103, %p104
      %p106 = scmp.ne.s32.totalorder %s94, %s95
      %p107 = scmp.eq.s32.totalorder %s24, 1
      %p108 = por %p106, %p107
      %p110 = scmp.ne.s32.totalorder %s95, %s109
      %p111 = scmp.eq.s32.totalorder %s24, 0
      %p112 = por %p110, %p111
      %s113 = ssub.s32 %s25, %s37
      %s114 = ssub.s32 %s26, %s33
      %s115 = sor.u32 %s113, %s114
      %p116 = scmp.eq.s32.totalorder %s115, 0
      %s118 = sadd.s32 %s117, 1
      %s119 = scalar_select %p116, %s117, %s118
      %p122 = pneg %p116
      %p123 = scmp.eq.s32.totalorder %s18, 1
      %p124 = por %p122, %p123
      %p125 = scmp.ne.s32.totalorder %s117, %s120
      %p126 = scmp.eq.s32.totalorder %s18, 0
      %p127 = por %p125, %p126
      %p128 = scmp.ne.s32.totalorder %s117, %s120
      %p129 = scmp.eq.s32.totalorder %s23, 1
      %p130 = por %p128, %p129
      %p131 = scmp.ne.s32.totalorder %s120, %s121
      %p132 = scmp.eq.s32.totalorder %s23, 0
      %p133 = por %p131, %p132
      %p134 = scmp.ne.s32.totalorder %s120, %s121
      %p135 = scmp.eq.s32.totalorder %s24, 1
      %p136 = por %p134, %p135
      %p138 = scmp.ne.s32.totalorder %s121, %s137
      %p139 = scmp.eq.s32.totalorder %s24, 0
      %p140 = por %p138, %p139
      %p141 = scmp.le.s32.totalorder 1, %s18
      %p142 = scmp.lt.s32.totalorder %s18, 3
      %p143 = pnand %p141, %p142
      %p144 = pneg %p143
      // Predicated region
      $region9: #{tpu_custom_call.1} parent=5 // pred_check
        _
      $region10: #{tpu_custom_call.1} parent=5 // pred_check_branch
        %146 = sbr.rel (%p143) target = $region12
      $region11: #{tpu_custom_call.1} parent=5 // pred_region
        %s147 = ssub.s32 %s18, 1
        // Predicated region
        $region13: #{tpu_custom_call.1} parent=11 // pred_check
          %p148 = pneg %p105
        $region14: #{tpu_custom_call.1} parent=11 // pred_check_branch
          %150 = sbr.rel (%p148) target = $region16
        $region15: #{tpu_custom_call.1} parent=11 // pred_region
          %s152 = ssub.s32 128, 128
          %153 = vsyncadd [#allocation6], %s152
          %s155 = sshll.u32 [#allocation7], 4
          %s156 = int_to_ptr.vmem [resolvable:$true] %s155
          %158 = dma.hbm_to_vmem [thread:$0]  %s2, 128, %s156, [#allocation6]
        $region16: #{tpu_custom_call.1} parent=11 // pred_fallthru
          _
      $region12: #{tpu_custom_call.1} parent=5 // pred_fallthru
        _
      %p159 = scmp.lt.s32.totalorder %s18, 2
      // Predicated region
      $region17: #{tpu_custom_call.1} parent=5 // pred_check
        %p160 = pneg %p159
      $region18: #{tpu_custom_call.1} parent=5 // pred_check_branch
        %162 = sbr.rel (%p160) target = $region20
      $region19: #{tpu_custom_call.1} parent=5 // pred_region
        // Predicated region
        $region21: #{tpu_custom_call.1} parent=19 // pred_check
          %p163 = pneg %p52
        $region22: #{tpu_custom_call.1} parent=19 // pred_check_branch
          %165 = sbr.rel (%p163) target = $region24
        $region23: #{tpu_custom_call.1} parent=19 // pred_region
          %s166 = sand.u32 %s42, 1
          %s167 = scalar_lea.sflag [#allocation3], %s166
          %s168 = sand.u32 %s42, 1
          %s169 = smul.addr %s168, 8
          %s170 = scalar_lea.vmem [#allocation2], %s169
          %s172 = ssub.s32 128, 128
          %173 = vsyncadd %s167, %s172
          %s174 = smul.addr %s26, 2
          %s175 = smul.addr %s25, 2
          %s176 = sadd.s32 %s174, %s175
          %s177 = smul.addr %s176, 64
          %s178 = scalar_lea.hbm %s0, %s177
          %s180 = sshll.u32 %s170, 4
          %s181 = int_to_ptr.vmem [resolvable:$true] %s180
          %183 = dma.hbm_to_vmem [thread:$0]  %s178, 128, %s181, %s167
        $region24: #{tpu_custom_call.1} parent=19 // pred_fallthru
          _
        // Predicated region
        $region25: #{tpu_custom_call.1} parent=19 // pred_check
          %p184 = pneg %p78
        $region26: #{tpu_custom_call.1} parent=19 // pred_check_branch
          %186 = sbr.rel (%p184) target = $region28
        $region27: #{tpu_custom_call.1} parent=19 // pred_region
          %s187 = sand.u32 %s18, 1
          %s188 = scalar_lea.sflag [#allocation6], %s187
          %s189 = sand.u32 %s68, 1
          %s190 = smul.addr %s189, 4
          %s191 = scalar_lea.vmem [#allocation5], %s190
          %s193 = ssub.s32 64, 64
          %194 = vsyncadd %s188, %s193
          %s195 = smul.addr %s25, 2
          %s196 = smul.addr %s195, 32
          %s197 = scalar_lea.hbm %s1, %s196
          %s199 = sshll.u32 %s191, 4
          %s200 = int_to_ptr.vmem [resolvable:$true] %s199
          %202 = dma.hbm_to_vmem [thread:$0]  %s197, 64, %s200, %s188
        $region28: #{tpu_custom_call.1} parent=19 // pred_fallthru
          _
      $region20: #{tpu_custom_call.1} parent=5 // pred_fallthru
        _
      %p203 = scmp.le.s32.totalorder 1, %s18
      %p204 = scmp.lt.s32.totalorder %s18, 3
      %p205 = pnand %p203, %p204
      %p206 = pneg %p205
      // Predicated region
      $region29: #{tpu_custom_call.1} parent=5 // pred_check
        _
      $region30: #{tpu_custom_call.1} parent=5 // pred_check_branch
        %208 = sbr.rel (%p205) target = $region32
      $region31: #{tpu_custom_call.1} parent=5 // pred_region
        %s209 = ssub.s32 %s18, 1
        %s210 = sand.u32 %s45, 1
        %s211 = scalar_lea.sflag [#allocation3], %s210
        %s212 = sand.u32 %s45, 1
        %s213 = smul.addr %s212, 8
        %s214 = scalar_lea.vmem [#allocation2], %s213
        // Predicated region
        $region33: #{tpu_custom_call.1} parent=31 // pred_check
          %p215 = pneg %p58
        $region34: #{tpu_custom_call.1} parent=31 // pred_check_branch
          %217 = sbr.rel (%p215) target = $region36
        $region35: #{tpu_custom_call.1} parent=31 // pred_region
          %218 = dma.done %s211, 128
        $region36: #{tpu_custom_call.1} parent=31 // pred_fallthru
          _
        %s219 = sand.u32 %s23, 1
        %s220 = scalar_lea.sflag [#allocation6], %s219
        %s221 = sand.u32 %s71, 1
        %s222 = smul.addr %s221, 4
        %s223 = scalar_lea.vmem [#allocation5], %s222
        // Predicated region
        $region37: #{tpu_custom_call.1} parent=31 // pred_check
          %p224 = pneg %p84
        $region38: #{tpu_custom_call.1} parent=31 // pred_check_branch
          %226 = sbr.rel (%p224) target = $region40
        $region39: #{tpu_custom_call.1} parent=31 // pred_region
          %227 = dma.done %s220, 64
        $region40: #{tpu_custom_call.1} parent=31 // pred_fallthru
          _
        // Predicated region
        $region41: #{tpu_custom_call.1} parent=31 // pred_check
          %p228 = pneg %p105
        $region42: #{tpu_custom_call.1} parent=31 // pred_check_branch
          %230 = sbr.rel (%p228) target = $region44
        $region43: #{tpu_custom_call.1} parent=31 // pred_region
          %231 = dma.done [#allocation6], 128
        $region44: #{tpu_custom_call.1} parent=31 // pred_fallthru
          _
        %s232 = sand.u32 %s45, 1
        %s233 = scalar_lea.sflag [#allocation3], %s232
        %s234 = sand.u32 %s45, 1
        %s235 = smul.addr %s234, 8
        %s236 = scalar_lea.vmem [#allocation2], %s235
        %p237 = pneg %p58
        %p238 = pneg %p55
        %s239 = sand.u32 %s23, 1
        %s240 = scalar_lea.sflag [#allocation6], %s239
        %s241 = sand.u32 %s71, 1
        %s242 = smul.addr %s241, 4
        %s243 = scalar_lea.vmem [#allocation5], %s242
        %p244 = pneg %p84
        %p245 = pneg %p81
        %p246 = pneg %p105
        %p247 = pneg %p102
        %p248 = pneg %p133
        %p249 = pneg %p130
        %s250 = sand.u32 %s120, 1
        %s251 = scalar_lea.sflag [#allocation4], %s250
        %s252 = sand.u32 %s120, 1
        %s253 = smul.addr %s252, 8
        %s254 = scalar_lea.vmem [#allocation8], %s253
        %v255 = vld [vmem:[%s223] ss:$2 sm:$0x3]
        %s256 = scalar_lea.vmem %s223, 1 [#allocation5]
        %v257 = vld [vmem:[%s256] ss:$2 sm:$0x3]
        %v258 = vld [vmem:[#allocation7] ss:$4 sm:$0x3]
        %s259 = scalar_lea.vmem [#allocation7], 1
        %v260 = vld [vmem:[%s259] ss:$4 sm:$0x3]
        %s261 = scalar_lea.vmem [#allocation7], 2
        %v262 = vld [vmem:[%s261] ss:$4 sm:$0x3]
        %s263 = scalar_lea.vmem [#allocation7], 3
        %v264 = vld [vmem:[%s263] ss:$4 sm:$0x3]
        %v265 = vld [vmem:[%s214] sm:$0xff]
        %v267 = vlaneseq
        %v268 = vshrl.u32 %v267, 7
        %v269 = vsub.s32 0, %v268
        %v270 = vrot.slane %v255, %v269
        %v271 = vlaneseq
        %v272 = vshrl.u32 %v271, 7
        %v273 = vsub.s32 1, %v272
        %v274 = vrot.slane %v255, %v273
        %v275 = vcombine.low %v270, %v274
        %v277 = vmul.f32 %v265, %v275
        %v279 = vcombine.high %v277, %v277
        %281 = vrot.lane.b32.xlu0 %v277, 1
        %v282 = vpop.permute.xlu0 %281
        %283 = vrot.lane.b32.xlu0 %v279, 1
        %v284 = vpop.permute.xlu0 %283
        %v285 = vlaneseq
        %v286 = vand.u32 %v285, 127
        %vm287 = vcmp.lt.s32.totalorder %v286, 1
        %v288 = vsel %vm287, %v282, %v284
        %v289 = vsel %vm287, %v284, %v282
        %v291 = vlaneseq
        %v292 = vshrl.u32 %v291, 7
        %v293 = vsub.s32 0, %v292
        %v294 = vrot.slane %v258, %v293
        %v295 = vlaneseq
        %v296 = vshrl.u32 %v295, 7
        %v297 = vsub.s32 1, %v296
        %v298 = vrot.slane %v258, %v297
        %v301 = vmul.f32 %v289, %v294
        %v302 = vmul.f32 %v288, %v298
        %v305 = vcombine.low %v301, %v302
        %v307 = vadd.f32 %v277, %v305
        %308 = vrot.lane.b32.xlu0 %v277, 127
        %v309 = vpop.permute.xlu0 %308
        %310 = vrot.lane.b32.xlu0 %v279, 127
        %v311 = vpop.permute.xlu0 %310
        %vm312 = vcmp.lt.s32.totalorder %v286, 127
        %v313 = vsel %vm312, %v309, %v311
        %v314 = vsel %vm312, %v311, %v309
        %v316 = vlaneseq
        %v317 = vshrl.u32 %v316, 7
        %v318 = vsub.s32 0, %v317
        %v319 = vrot.slane %v260, %v318
        %v320 = vlaneseq
        %v321 = vshrl.u32 %v320, 7
        %v322 = vsub.s32 1, %v321
        %v323 = vrot.slane %v260, %v322
        %v326 = vmul.f32 %v313, %v319
        %v327 = vmul.f32 %v314, %v323
        %v330 = vcombine.low %v326, %v327
        %v332 = vadd.f32 %v307, %v330
        %v334 = vcombine.high %v332, %v332
        %336 = vrot.lane.b32.xlu0 %v332, 16
        %v337 = vpop.permute.xlu0 %336
        %338 = vrot.lane.b32.xlu0 %v334, 16
        %v339 = vpop.permute.xlu0 %338
        %vm340 = vcmp.lt.s32.totalorder %v286, 16
        %v341 = vsel %vm340, %v337, %v339
        %v342 = vsel %vm340, %v339, %v337
        %v344 = vlaneseq
        %v345 = vshrl.u32 %v344, 7
        %v346 = vsub.s32 0, %v345
        %v347 = vrot.slane %v262, %v346
        %v348 = vlaneseq
        %v349 = vshrl.u32 %v348, 7
        %v350 = vsub.s32 1, %v349
        %v351 = vrot.slane %v262, %v350
        %v354 = vmul.f32 %v342, %v347
        %v355 = vmul.f32 %v341, %v351
        %v358 = vcombine.low %v354, %v355
        %v360 = vadd.f32 %v332, %v358
        %361 = vrot.lane.b32.xlu0 %v332, 112
        %v362 = vpop.permute.xlu0 %361
        %363 = vrot.lane.b32.xlu0 %v334, 112
        %v364 = vpop.permute.xlu0 %363
        %vm365 = vcmp.lt.s32.totalorder %v286, 112
        %v366 = vsel %vm365, %v362, %v364
        %v367 = vsel %vm365, %v364, %v362
        %v369 = vlaneseq
        %v370 = vshrl.u32 %v369, 7
        %v371 = vsub.s32 0, %v370
        %v372 = vrot.slane %v264, %v371
        %v373 = vlaneseq
        %v374 = vshrl.u32 %v373, 7
        %v375 = vsub.s32 1, %v374
        %v376 = vrot.slane %v264, %v375
        %v379 = vmul.f32 %v366, %v372
        %v380 = vmul.f32 %v367, %v376
        %v383 = vcombine.low %v379, %v380
        %v385 = vadd.f32 %v360, %v383
        %v387 = vlaneseq
        %v388 = vshrl.u32 %v387, 7
        %v389 = vsub.s32 0, %v388
        %v390 = vrot.slane %v257, %v389
        %v391 = vlaneseq
        %v392 = vshrl.u32 %v391, 7
        %v393 = vsub.s32 1, %v392
        %v394 = vrot.slane %v257, %v393
        %v395 = vcombine.low %v390, %v394
        %v397 = vmul.f32 %v385, %v395
        %v398 = vadd.f32 %v277, %v397
        %399 = vst [vmem:[%s254] sm:$0xff] %v398
        %s400 = sand.u32 %s120, 1
        %s401 = scalar_lea.sflag [#allocation4], %s400
        %s402 = sand.u32 %s120, 1
        %s403 = smul.addr %s402, 8
        %s404 = scalar_lea.vmem [#allocation8], %s403
        // Predicated region
        $region45: #{tpu_custom_call.1} parent=31 // pred_check
          %p405 = pneg %p130
        $region46: #{tpu_custom_call.1} parent=31 // pred_check_branch
          %407 = sbr.rel (%p405) target = $region48
        $region47: #{tpu_custom_call.1} parent=31 // pred_region
          %s409 = ssub.s32 128, 128
          %410 = vsyncadd %s401, %s409
          %s411 = smul.addr %s28, 2
          %s412 = smul.addr %s27, 2
          %s413 = sadd.s32 %s411, %s412
          %s414 = smul.addr %s413, 64
          %s415 = scalar_lea.hbm %s3, %s414
          %s417 = sshll.u32 %s404, 4
          %s418 = int_to_ptr.vmem [resolvable:$true] %s417
          %420 = dma.vmem_to_hbm [thread:$0]  %s418, 128, %s415, %s401
        $region48: #{tpu_custom_call.1} parent=31 // pred_fallthru
          _
      $region32: #{tpu_custom_call.1} parent=5 // pred_fallthru
        _
      %p421 = scmp.le.s32.totalorder 2, %s18
      // Predicated region
      $region49: #{tpu_custom_call.1} parent=5 // pred_check
        %p422 = pneg %p421
      $region50: #{tpu_custom_call.1} parent=5 // pred_check_branch
        %424 = sbr.rel (%p422) target = $region52
      $region51: #{tpu_custom_call.1} parent=5 // pred_region
        %s425 = ssub.s32 %s18, 2
        // Predicated region
        $region53: #{tpu_custom_call.1} parent=51 // pred_check
          %p426 = pneg %p136
        $region54: #{tpu_custom_call.1} parent=51 // pred_check_branch
          %428 = sbr.rel (%p426) target = $region56
        $region55: #{tpu_custom_call.1} parent=51 // pred_region
          %s429 = sand.u32 %s121, 1
          %s430 = scalar_lea.sflag [#allocation4], %s429
          %s431 = sand.u32 %s121, 1
          %s432 = smul.addr %s431, 8
          %s433 = scalar_lea.vmem [#allocation8], %s432
          %434 = dma.done %s430, 128
        $region56: #{tpu_custom_call.1} parent=51 // pred_fallthru
          _
      $region52: #{tpu_custom_call.1} parent=5 // pred_fallthru
        _
    $region6: #{tpu_custom_call.1} parent=1 // loop_footer
      %s22 = sadd.s32 1, %s18
    $region7: #{tpu_custom_call.1} parent=1 // loop_footer_branch
      %17 = sbr.rel target = $region3
    $region8: #{tpu_custom_call.1} parent=1 // loop_exit
      _
    %435 = vsyncpa [#allocation3], 1
    %s436 = scalar_lea.sflag [#allocation3], 1
    %437 = vsyncpa %s436, 1
    %438 = vsyncpa [#allocation6], 1
    %s439 = scalar_lea.sflag [#allocation6], 1
    %440 = vsyncpa %s439, 1
    %441 = vsyncpa [#allocation4], 1
    %s442 = scalar_lea.sflag [#allocation4], 1
    %443 = vsyncpa %s442, 1

</llo_original>
